<compile_context>
chip_gen: v6e
topology: v6e:2x2x1
jax: 0.10.0
libtpu: 0.0.40
codegen_flags: <defaults>
</compile_context>

<pallas_src>
import jax
import jax.numpy as jnp
from jax.experimental import pallas as pl
from jax.experimental.pallas import tpu as pltpu

# Layer widths for the MLP (the PyTorch module reads this global).
numbers_for_layer_model = [32, 64, 48, 16]

PACK = 8      # logical samples folded into one physical (lane) row
LANE = 128


def _round_up(x, m):
    return ((x + m - 1) // m) * m


def _fused_mlp_kernel(x_ref, w0_ref, b0_ref, w1_ref, b1_ref, w2_ref, b2_ref,
                      o_ref):
    """relu(relu(xp @ W0bd + b0) @ W1bd + b1) @ W2bd + b2 on batch-folded tiles.

    x_ref : [rp, PACK*F0]            packed activations (8 samples per row)
    wK_ref: [PACK*F_in, PACK*F_out]  block-diagonal weights (VMEM-resident)
    bK_ref: [1, PACK*F_out]          8x-tiled biases
    o_ref : [rp, PACK*F_last]        packed output (lane-dense, 128 wide)

    The 8 samples in a row never mix because the weights are block-diagonal.
    Accumulation and the bias+ReLU epilogue are always f32; storage dtype of
    the weights/activations may be bf16.
    """
    wdtype = w0_ref.dtype

    h = jnp.dot(x_ref[...].astype(wdtype), w0_ref[...],
                preferred_element_type=jnp.float32)
    h = jnp.maximum(h + b0_ref[...].astype(jnp.float32), 0.0)

    h = jnp.dot(h.astype(wdtype), w1_ref[...],
                preferred_element_type=jnp.float32)
    h = jnp.maximum(h + b1_ref[...].astype(jnp.float32), 0.0)

    h = jnp.dot(h.astype(wdtype), w2_ref[...],
                preferred_element_type=jnp.float32)
    o_ref[...] = (h + b2_ref[...].astype(jnp.float32)).astype(o_ref.dtype)


def mlp_forward_pallas(x, pallas_params, *, block_rows=1024):
    """x: [B, F0] f32 -> [B, F_last] f32 via a single fused pallas_call.

    block_rows is in packed rows (1 packed row = PACK samples); the default
    1024 packed rows = 8192 samples per grid step.
    """
    (w0, b0), (w1, b1), (w2, b2) = pallas_params   # block-diagonal / tiled
    B, F0 = x.shape
    F_out = numbers_for_layer_model[-1]
    assert w0.shape[0] == PACK * F0
    assert w2.shape[1] == PACK * F_out == LANE

    # Fold 8 samples per physical row.  Only a <=7 row tail pad is ever needed
    # (costs one copy of x in that rare ragged case; no full-tile batch pad).
    B8 = _round_up(B, PACK)
    if B8 != B:
        x = jnp.pad(x, ((0, B8 - B), (0, 0)))
    Rp = B8 // PACK
    xp = x.reshape(Rp, PACK * F0)            # contiguous -> lane-dense tiles

    # Packed-row tile: big enough to amortize per-step overhead, capped so the
    # grid keeps >= 2 steps (both v7x TensorCores engage), multiple of 8
    # sublanes whenever it tiles (full-dim blocks are legal otherwise).
    if Rp <= 8:
        rp = Rp
    else:
        rp = min(block_rows, _round_up(pl.cdiv(Rp, 2), 8))
    grid = (pl.cdiv(Rp, rp),)

    fin0, fout0 = w0.shape
    fin1, fout1 = w1.shape
    fin2, fout2 = w2.shape
    x_item = jnp.dtype(x.dtype).itemsize
    w_item = jnp.dtype(w0.dtype).itemsize
    cost = pl.CostEstimate(
        flops=2 * Rp * (fin0 * fout0 + fin1 * fout1 + fin2 * fout2),
        transcendentals=0,
        bytes_accessed=(Rp * fin0 * x_item          # packed input
                        + Rp * fout2 * 4            # packed f32 output
                        + (w0.size + b0.size + w1.size + b1.size
                           + w2.size + b2.size) * w_item),
    )

    op = pl.pallas_call(
        _fused_mlp_kernel,
        out_shape=jax.ShapeDtypeStruct((Rp, PACK * F_out), jnp.float32),
        grid=grid,
        in_specs=[
            pl.BlockSpec((rp, PACK * F0), lambda i: (i, 0)),  # activations:
                                                              # pipelined
            pl.BlockSpec((fin0, fout0), lambda i: (0, 0)),    # weights/biases
            pl.BlockSpec((1, fout0), lambda i: (0, 0)),       # stay VMEM-
            pl.BlockSpec((fin1, fout1), lambda i: (0, 0)),    # resident (same
            pl.BlockSpec((1, fout1), lambda i: (0, 0)),       # block each step)
            pl.BlockSpec((fin2, fout2), lambda i: (0, 0)),
            pl.BlockSpec((1, fout2), lambda i: (0, 0)),
        ],
        out_specs=pl.BlockSpec((rp, PACK * F_out), lambda i: (i, 0)),
        compiler_params=pltpu.CompilerParams(
            dimension_semantics=("parallel",)),               # 2 TCs on v7x
        cost_estimate=cost,
    )(xp, w0, b0, w1, b1, w2, b2)

    out = op.reshape(B8, F_out)              # contiguous unpack
    if B8 != B:
        out = out[:B]
    return out


def init_params(key, layer_sizes):
    """nn.Linear-style init (kaiming-uniform weight / uniform bias).

    Weights stored pre-transposed as [F_in, F_out]; biases as [1, F_out].
    """
    params = []
    for f_in, f_out in zip(layer_sizes[:-1], layer_sizes[1:]):
        key, kw, kb = jax.random.split(key, 3)
        bound = 1.0 / jnp.sqrt(jnp.float32(f_in))
        w = jax.random.uniform(kw, (f_in, f_out), jnp.float32, -bound, bound)
        b = jax.random.uniform(kb, (1, f_out), jnp.float32, -bound, bound)
        params.append((w, b))
    return params


def _block_diag(w, n):
    f_in, f_out = w.shape
    out = jnp.zeros((n * f_in, n * f_out), w.dtype)
    for s in range(n):
        out = out.at[s * f_in:(s + 1) * f_in,
                     s * f_out:(s + 1) * f_out].set(w)
    return out


def prepare_params_for_pallas(params, *, dtype=jnp.float32):
    """Block-diagonalize weights / tile biases for 8-way batch folding and
    cast to the storage dtype.  bf16 storage halves DMA bytes (v6e/v7x MXU
    native) but is not bit-matching nn.Linear; accumulation stays f32."""
    prepped = []
    for w, b in params:
        wbd = _block_diag(w, PACK)
        bt = jnp.tile(b, (1, PACK))
        prepped.append((wbd.astype(dtype), bt.astype(dtype)))
    return prepped


@jax.jit
def net_forward(x, pallas_params):
    return mlp_forward_pallas(x, pallas_params)


def net_reference(x, params):
    """Pure-JAX reference matching the PyTorch module."""
    out = x
    n = len(params)
    for i, (w, b) in enumerate(params):
        out = out @ w + b
        if i != n - 1:
            out = jnp.maximum(out, 0.0)
    return out


if __name__ == "__main__":
    key = jax.random.PRNGKey(0)
    kx, kp, kx2, kx3 = jax.random.split(key, 4)

    params = init_params(kp, numbers_for_layer_model)
    p_f32 = prepare_params_for_pallas(params, dtype=jnp.float32)

    # --- small batch (single grid step), f32 storage: exact semantics.
    batch = 8
    x = jax.random.normal(kx, (batch, numbers_for_layer_model[0]), jnp.float32)
    out = net_forward(x, p_f32)
    jax.block_until_ready(out)
    ref = net_reference(x, params)
    assert out.shape == (batch, numbers_for_layer_model[-1])
    assert jnp.allclose(out, ref, atol=1e-5, rtol=1e-5)

    # --- multi-step grid with a partial (ragged) boundary block.
    batch2 = 1000                      # Rp = 125 -> blocks of 64 + partial 61
    x2 = jax.random.normal(kx2, (batch2, numbers_for_layer_model[0]),
                           jnp.float32)
    out2 = jax.jit(
        lambda a, p: mlp_forward_pallas(a, p, block_rows=64))(x2, p_f32)
    jax.block_until_ready(out2)
    ref2 = net_reference(x2, params)
    assert out2.shape == (batch2, numbers_for_layer_model[-1])
    assert jnp.allclose(out2, ref2, atol=1e-5, rtol=1e-5)

    # --- batch not a multiple of 8 (exercises the small tail pad).
    batch3 = 1003
    x3 = jax.random.normal(kx3, (batch3, numbers_for_layer_model[0]),
                           jnp.float32)
    out3 = net_forward(x3, p_f32)
    jax.block_until_ready(out3)
    ref3 = net_reference(x3, params)
    assert out3.shape == (batch3, numbers_for_layer_model[-1])
    assert jnp.allclose(out3, ref3, atol=1e-5, rtol=1e-5)

    # --- bf16 storage path (v6e/v7x bandwidth/MXU win), relaxed tolerance.
    p_bf16 = prepare_params_for_pallas(params, dtype=jnp.bfloat16)
    out_bf16 = net_forward(x, p_bf16)
    jax.block_until_ready(out_bf16)
    assert jnp.allclose(out_bf16, ref, atol=2e-2, rtol=2e-2)

    print("KERNEL_OK")
</pallas_src>

<mosaic_0001>
module attributes {stable_mosaic.version = 11 : i64} {
  func.func @_fused_mlp_kernel(%arg0: i32, %arg1: memref<1x256xf32, #tpu.memory_space<vmem>>, %arg2: memref<256x512xf32, #tpu.memory_space<vmem>>, %arg3: memref<1x512xf32, #tpu.memory_space<vmem>>, %arg4: memref<512x384xf32, #tpu.memory_space<vmem>>, %arg5: memref<1x384xf32, #tpu.memory_space<vmem>>, %arg6: memref<384x128xf32, #tpu.memory_space<vmem>>, %arg7: memref<1x128xf32, #tpu.memory_space<vmem>>, %arg8: memref<1x128xf32, #tpu.memory_space<vmem>>) attributes {dimension_semantics = [#tpu.dimension_semantics<parallel>], iteration_bounds = array<i64: 1>, scalar_prefetch = 0 : i64, scratch_operands = 0 : i64, tpu.core_type = #tpu.core_type<tc>, window_params = [{transform_indices = @transform_0, window_bounds = array<i64: 1, 256>}, {pipeline_mode = #tpu.pipeline_mode<synchronous>, transform_indices = @transform_1, window_bounds = array<i64: 256, 512>}, {pipeline_mode = #tpu.pipeline_mode<synchronous>, transform_indices = @transform_2, window_bounds = array<i64: 1, 512>}, {pipeline_mode = #tpu.pipeline_mode<synchronous>, transform_indices = @transform_3, window_bounds = array<i64: 512, 384>}, {pipeline_mode = #tpu.pipeline_mode<synchronous>, transform_indices = @transform_4, window_bounds = array<i64: 1, 384>}, {pipeline_mode = #tpu.pipeline_mode<synchronous>, transform_indices = @transform_5, window_bounds = array<i64: 384, 128>}, {pipeline_mode = #tpu.pipeline_mode<synchronous>, transform_indices = @transform_6, window_bounds = array<i64: 1, 128>}, {transform_indices = @transform_7, window_bounds = array<i64: 1, 128>}]} {
    %c0 = arith.constant 0 : index
    %c0_0 = arith.constant 0 : index
    %0 = vector.load %arg1[%c0, %c0_0] : memref<1x256xf32, #tpu.memory_space<vmem>>, vector<1x256xf32>
    %c0_1 = arith.constant 0 : index
    %c0_2 = arith.constant 0 : index
    %1 = vector.load %arg2[%c0_1, %c0_2] : memref<256x512xf32, #tpu.memory_space<vmem>>, vector<256x512xf32>
    %cst = arith.constant dense<0.000000e+00> : vector<1x512xf32>
    %2 = tpu.matmul %0, %1, %cst {dimension_numbers = #tpu.dot_dimension_numbers<[1], [0], [0], [1], [0, 0, 1, 1], [], []>} : vector<1x256xf32>, vector<256x512xf32>, vector<1x512xf32> -> vector<1x512xf32>
    %c0_3 = arith.constant 0 : index
    %c0_4 = arith.constant 0 : index
    %3 = vector.load %arg3[%c0_3, %c0_4] : memref<1x512xf32, #tpu.memory_space<vmem>>, vector<1x512xf32>
    %4 = arith.addf %2, %3 : vector<1x512xf32>
    %cst_5 = arith.constant 0.000000e+00 : f32
    %5 = vector.broadcast %cst_5 : f32 to vector<1x512xf32>
    %6 = arith.maximumf %4, %5 : vector<1x512xf32>
    %c0_6 = arith.constant 0 : index
    %c0_7 = arith.constant 0 : index
    %7 = vector.load %arg4[%c0_6, %c0_7] : memref<512x384xf32, #tpu.memory_space<vmem>>, vector<512x384xf32>
    %cst_8 = arith.constant dense<0.000000e+00> : vector<1x384xf32>
    %8 = tpu.matmul %6, %7, %cst_8 {dimension_numbers = #tpu.dot_dimension_numbers<[1], [0], [0], [1], [0, 0, 1, 1], [], []>} : vector<1x512xf32>, vector<512x384xf32>, vector<1x384xf32> -> vector<1x384xf32>
    %c0_9 = arith.constant 0 : index
    %c0_10 = arith.constant 0 : index
    %9 = vector.load %arg5[%c0_9, %c0_10] : memref<1x384xf32, #tpu.memory_space<vmem>>, vector<1x384xf32>
    %10 = arith.addf %8, %9 : vector<1x384xf32>
    %cst_11 = arith.constant 0.000000e+00 : f32
    %11 = vector.broadcast %cst_11 : f32 to vector<1x384xf32>
    %12 = arith.maximumf %10, %11 : vector<1x384xf32>
    %c0_12 = arith.constant 0 : index
    %c0_13 = arith.constant 0 : index
    %13 = vector.load %arg6[%c0_12, %c0_13] : memref<384x128xf32, #tpu.memory_space<vmem>>, vector<384x128xf32>
    %cst_14 = arith.constant dense<0.000000e+00> : vector<1x128xf32>
    %14 = tpu.matmul %12, %13, %cst_14 {dimension_numbers = #tpu.dot_dimension_numbers<[1], [0], [0], [1], [0, 0, 1, 1], [], []>} : vector<1x384xf32>, vector<384x128xf32>, vector<1x128xf32> -> vector<1x128xf32>
    %c0_15 = arith.constant 0 : index
    %c0_16 = arith.constant 0 : index
    %15 = vector.load %arg7[%c0_15, %c0_16] : memref<1x128xf32, #tpu.memory_space<vmem>>, vector<1x128xf32>
    %16 = arith.addf %14, %15 : vector<1x128xf32>
    %c0_17 = arith.constant 0 : index
    %c0_18 = arith.constant 0 : index
    %17 = vector.load %arg8[%c0_17, %c0_18] : memref<1x128xf32, #tpu.memory_space<vmem>>, vector<1x128xf32>
    tpu.vector_store %arg8[%c0_17, %c0_18], %16 {strides = array<i32>} : memref<1x128xf32, #tpu.memory_space<vmem>>, vector<1x128xf32>,
    return
  }
  func.func @transform_0(%arg0: i32) -> (i32, i32) {
    %c0_i32 = arith.constant 0 : i32
    %c0_i32_0 = arith.constant 0 : i32
    return %arg0, %c0_i32 : i32, i32
  }
  func.func @transform_1(%arg0: i32) -> (i32, i32) {
    %c0_i32 = arith.constant 0 : i32
    %c0_i32_0 = arith.constant 0 : i32
    %c0_i32_1 = arith.constant 0 : i32
    return %c0_i32, %c0_i32_0 : i32, i32
  }
  func.func @transform_2(%arg0: i32) -> (i32, i32) {
    %c0_i32 = arith.constant 0 : i32
    %c0_i32_0 = arith.constant 0 : i32
    %c0_i32_1 = arith.constant 0 : i32
    return %c0_i32, %c0_i32_0 : i32, i32
  }
  func.func @transform_3(%arg0: i32) -> (i32, i32) {
    %c0_i32 = arith.constant 0 : i32
    %c0_i32_0 = arith.constant 0 : i32
    %c0_i32_1 = arith.constant 0 : i32
    return %c0_i32, %c0_i32_0 : i32, i32
  }
  func.func @transform_4(%arg0: i32) -> (i32, i32) {
    %c0_i32 = arith.constant 0 : i32
    %c0_i32_0 = arith.constant 0 : i32
    %c0_i32_1 = arith.constant 0 : i32
    return %c0_i32, %c0_i32_0 : i32, i32
  }
  func.func @transform_5(%arg0: i32) -> (i32, i32) {
    %c0_i32 = arith.constant 0 : i32
    %c0_i32_0 = arith.constant 0 : i32
    %c0_i32_1 = arith.constant 0 : i32
    return %c0_i32, %c0_i32_0 : i32, i32
  }
  func.func @transform_6(%arg0: i32) -> (i32, i32) {
    %c0_i32 = arith.constant 0 : i32
    %c0_i32_0 = arith.constant 0 : i32
    %c0_i32_1 = arith.constant 0 : i32
    return %c0_i32, %c0_i32_0 : i32, i32
  }
  func.func @transform_7(%arg0: i32) -> (i32, i32) {
    %c0_i32 = arith.constant 0 : i32
    %c0_i32_0 = arith.constant 0 : i32
    return %arg0, %c0_i32 : i32, i32
  }
}

</mosaic_0001>

<llo_original>
// kernel: net_forward.1
$region0: #{net_forward.1}
  #allocation0 [shape = 'u32[]', space=smem, size = 0x4, offset = 0x4, fixed_abs, tag = 'smem constant byte address 0x4 - core index']
  #allocation1 [shape = 'u32[144,128]{1,0:T(1,128)}', space=vmem, size = 0x12000, scoped, tag = 'internal scratch']
  %s0 = inlined_call_operand.vmem [shape: f32[1,256], index: 0, kind: input, shape index: {}]
  %s1 = inlined_call_operand.hbm [shape: f32[256,512], index: 1, kind: input, shape index: {}]
  %s2 = inlined_call_operand.vmem [shape: f32[1,512], index: 2, kind: input, shape index: {}]
  %s3 = inlined_call_operand.hbm [shape: f32[512,384], index: 3, kind: input, shape index: {}]
  %s4 = inlined_call_operand.vmem [shape: f32[1,384], index: 4, kind: input, shape index: {}]
  %s5 = inlined_call_operand.hbm [shape: f32[384,128], index: 5, kind: input, shape index: {}]
  %s6 = inlined_call_operand.vmem [shape: f32[1,128], index: 6, kind: input, shape index: {}]
  %s7 = inlined_call_operand.vmem [shape: f32[1,128], index: 7, kind: output, shape index: {}]
  %s8 = sld [smem:[#allocation0]]
  $region50: #{net_forward.1} parent=0
    _
  %s10 = ssub.s32 1, %s8
  %s11 = scalar_select 0, %s10, %s8
  $region1: #{net_forward.1} parent=0
    #allocation2 [shape = 'u8[524288]{0}', space=vmem, size = 0x80000, scoped, tag = 'input window, operand 1, single buffered']
    #allocation3 [shape = 's32[1]{0}', space=sflag, size = 0x4, scoped, tag = 'scoped memory for net_forward.1']
    #allocation4 [shape = 'u8[786432]{0}', space=vmem, size = 0xc0000, scoped, tag = 'input window, operand 3, single buffered']
    #allocation5 [shape = 's32[1]{0}', space=sflag, size = 0x4, scoped, tag = 'scoped memory for net_forward.1']
    #allocation6 [shape = 'u8[196608]{0}', space=vmem, size = 0x30000, scoped, tag = 'input window, operand 5, single buffered']
    %12 = vsyncpa [#allocation3], 0
    %13 = vsyncpa [#allocation5], 0
    // Predicated region
    $region2: #{net_forward.1} parent=1 // pred_check
      _
    $region3: #{net_forward.1} parent=1 // pred_check_branch
      %15 = sbr.rel (0) target = $region5
    $region4: #{net_forward.1} parent=1 // pred_region
      _
    $region5: #{net_forward.1} parent=1 // pred_fallthru
      _
    // Predicated region
    $region6: #{net_forward.1} parent=1 // pred_check
      _
    $region7: #{net_forward.1} parent=1 // pred_check_branch
      %17 = sbr.rel (0) target = $region9
    $region8: #{net_forward.1} parent=1 // pred_region
      %s19 = ssub.s32 16384, 16384
      %20 = vsyncadd [#allocation3], %s19
      %s21 = sshll.u32 [#allocation2], 4
      %s22 = int_to_ptr.vmem [resolvable:$true] %s21
      %27 = dma.hbm_to_vmem [thread:$0]  %s1, 16384, %s22, [#allocation3], 512, 512, 32
    $region9: #{net_forward.1} parent=1 // pred_fallthru
      _
    // Predicated region
    $region10: #{net_forward.1} parent=1 // pred_check
      _
    $region11: #{net_forward.1} parent=1 // pred_check_branch
      %29 = sbr.rel (0) target = $region13
    $region12: #{net_forward.1} parent=1 // pred_region
      _
    $region13: #{net_forward.1} parent=1 // pred_fallthru
      _
    // Predicated region
    $region14: #{net_forward.1} parent=1 // pred_check
      _
    $region15: #{net_forward.1} parent=1 // pred_check_branch
      %31 = sbr.rel (0) target = $region17
    $region16: #{net_forward.1} parent=1 // pred_region
      %s33 = ssub.s32 24576, 24576
      %34 = vsyncadd [#allocation5], %s33
      %s35 = sshll.u32 [#allocation4], 4
      %s36 = int_to_ptr.vmem [resolvable:$true] %s35
      %41 = dma.hbm_to_vmem [thread:$0]  %s3, 24576, %s36, [#allocation5], 384, 384, 24
    $region17: #{net_forward.1} parent=1 // pred_fallthru
      _
    // Predicated region
    $region18: #{net_forward.1} parent=1 // pred_check
      _
    $region19: #{net_forward.1} parent=1 // pred_check_branch
      %43 = sbr.rel (0) target = $region21
    $region20: #{net_forward.1} parent=1 // pred_region
      _
    $region21: #{net_forward.1} parent=1 // pred_fallthru
      _
    // Predicated region
    $region22: #{net_forward.1} parent=1 // pred_check
      _
    $region23: #{net_forward.1} parent=1 // pred_check_branch
      %45 = sbr.rel (0) target = $region25
    $region24: #{net_forward.1} parent=1 // pred_region
      %s47 = ssub.s32 6144, 6144
      %48 = vsyncadd [#allocation5], %s47
      %s49 = sshll.u32 [#allocation6], 4
      %s50 = int_to_ptr.vmem [resolvable:$true] %s49
      %55 = dma.hbm_to_vmem [thread:$0]  %s5, 6144, %s50, [#allocation5], 128, 128, 8
    $region25: #{net_forward.1} parent=1 // pred_fallthru
      _
    // Predicated region
    $region26: #{net_forward.1} parent=1 // pred_check
      _
    $region27: #{net_forward.1} parent=1 // pred_check_branch
      %57 = sbr.rel (0) target = $region29
    $region28: #{net_forward.1} parent=1 // pred_region
      _
    $region29: #{net_forward.1} parent=1 // pred_fallthru
      _
    // Predicated region
    $region30: #{net_forward.1} parent=1 // pred_check
      _
    $region31: #{net_forward.1} parent=1 // pred_check_branch
      %59 = sbr.rel (0) target = $region33
    $region32: #{net_forward.1} parent=1 // pred_region
      %60 = dma.done [#allocation3], 16384
    $region33: #{net_forward.1} parent=1 // pred_fallthru
      _
    // Predicated region
    $region34: #{net_forward.1} parent=1 // pred_check
      _
    $region35: #{net_forward.1} parent=1 // pred_check_branch
      %62 = sbr.rel (0) target = $region37
    $region36: #{net_forward.1} parent=1 // pred_region
      %63 = dma.done [#allocation5], 24576
    $region37: #{net_forward.1} parent=1 // pred_fallthru
      _
    // Predicated region
    $region38: #{net_forward.1} parent=1 // pred_check
      _
    $region39: #{net_forward.1} parent=1 // pred_check_branch
      %65 = sbr.rel (0) target = $region41
    $region40: #{net_forward.1} parent=1 // pred_region
      %66 = dma.done [#allocation5], 6144
    $region41: #{net_forward.1} parent=1 // pred_fallthru
      _
    %v67 = vld [vmem:[%s0] sm:$0x3]
    %v68 = vld [vmem:[#allocation2] sm:$0xff]
    %v69 = vld [vmem:[#allocation2 + $0x8] sm:$0xff]
    %v70 = vld [vmem:[#allocation2 + $0x10] sm:$0xff]
    %v71 = vld [vmem:[#allocation2 + $0x18] sm:$0xff]
    %v72 = vld [vmem:[#allocation2 + $0x20] sm:$0xff]
    %v73 = vld [vmem:[#allocation2 + $0x28] sm:$0xff]
    %v74 = vld [vmem:[#allocation2 + $0x30] sm:$0xff]
    %v75 = vld [vmem:[#allocation2 + $0x38] sm:$0xff]
    %v76 = vld [vmem:[#allocation2 + $0x40] sm:$0xff]
    %v77 = vld [vmem:[#allocation2 + $0x48] sm:$0xff]
    %v78 = vld [vmem:[#allocation2 + $0x50] sm:$0xff]
    %v79 = vld [vmem:[#allocation2 + $0x58] sm:$0xff]
    %v80 = vld [vmem:[#allocation2 + $0x60] sm:$0xff]
    %v81 = vld [vmem:[#allocation2 + $0x68] sm:$0xff]
    %v82 = vld [vmem:[#allocation2 + $0x70] sm:$0xff]
    %v83 = vld [vmem:[#allocation2 + $0x78] sm:$0xff]
    %v84 = vld [vmem:[#allocation2 + $0x80] sm:$0xff]
    %v85 = vld [vmem:[#allocation2 + $0x88] sm:$0xff]
    %v86 = vld [vmem:[#allocation2 + $0x90] sm:$0xff]
    %v87 = vld [vmem:[#allocation2 + $0x98] sm:$0xff]
    %v88 = vld [vmem:[#allocation2 + $0xa0] sm:$0xff]
    %v89 = vld [vmem:[#allocation2 + $0xa8] sm:$0xff]
    %v90 = vld [vmem:[#allocation2 + $0xb0] sm:$0xff]
    %v91 = vld [vmem:[#allocation2 + $0xb8] sm:$0xff]
    %v92 = vld [vmem:[#allocation2 + $0xc0] sm:$0xff]
    %v93 = vld [vmem:[#allocation2 + $0xc8] sm:$0xff]
    %v94 = vld [vmem:[#allocation2 + $0xd0] sm:$0xff]
    %v95 = vld [vmem:[#allocation2 + $0xd8] sm:$0xff]
    %v96 = vld [vmem:[#allocation2 + $0xe0] sm:$0xff]
    %v97 = vld [vmem:[#allocation2 + $0xe8] sm:$0xff]
    %v98 = vld [vmem:[#allocation2 + $0xf0] sm:$0xff]
    %v99 = vld [vmem:[#allocation2 + $0xf8] sm:$0xff]
    %v100 = vld [vmem:[#allocation2 + $0x100] sm:$0xff]
    %v101 = vld [vmem:[#allocation2 + $0x108] sm:$0xff]
    %v102 = vld [vmem:[#allocation2 + $0x110] sm:$0xff]
    %v103 = vld [vmem:[#allocation2 + $0x118] sm:$0xff]
    %v104 = vld [vmem:[#allocation2 + $0x120] sm:$0xff]
    %v105 = vld [vmem:[#allocation2 + $0x128] sm:$0xff]
    %v106 = vld [vmem:[#allocation2 + $0x130] sm:$0xff]
    %v107 = vld [vmem:[#allocation2 + $0x138] sm:$0xff]
    %v108 = vld [vmem:[#allocation2 + $0x140] sm:$0xff]
    %v109 = vld [vmem:[#allocation2 + $0x148] sm:$0xff]
    %v110 = vld [vmem:[#allocation2 + $0x150] sm:$0xff]
    %v111 = vld [vmem:[#allocation2 + $0x158] sm:$0xff]
    %v112 = vld [vmem:[#allocation2 + $0x160] sm:$0xff]
    %v113 = vld [vmem:[#allocation2 + $0x168] sm:$0xff]
    %v114 = vld [vmem:[#allocation2 + $0x170] sm:$0xff]
    %v115 = vld [vmem:[#allocation2 + $0x178] sm:$0xff]
    %v116 = vld [vmem:[#allocation2 + $0x180] sm:$0xff]
    %v117 = vld [vmem:[#allocation2 + $0x188] sm:$0xff]
    %v118 = vld [vmem:[#allocation2 + $0x190] sm:$0xff]
    %v119 = vld [vmem:[#allocation2 + $0x198] sm:$0xff]
    %v120 = vld [vmem:[#allocation2 + $0x1a0] sm:$0xff]
    %v121 = vld [vmem:[#allocation2 + $0x1a8] sm:$0xff]
    %v122 = vld [vmem:[#allocation2 + $0x1b0] sm:$0xff]
    %v123 = vld [vmem:[#allocation2 + $0x1b8] sm:$0xff]
    %v124 = vld [vmem:[#allocation2 + $0x1c0] sm:$0xff]
    %v125 = vld [vmem:[#allocation2 + $0x1c8] sm:$0xff]
    %v126 = vld [vmem:[#allocation2 + $0x1d0] sm:$0xff]
    %v127 = vld [vmem:[#allocation2 + $0x1d8] sm:$0xff]
    %v128 = vld [vmem:[#allocation2 + $0x1e0] sm:$0xff]
    %v129 = vld [vmem:[#allocation2 + $0x1e8] sm:$0xff]
    %v130 = vld [vmem:[#allocation2 + $0x1f0] sm:$0xff]
    %v131 = vld [vmem:[#allocation2 + $0x1f8] sm:$0xff]
    %v132 = vld [vmem:[#allocation2 + $0x200] sm:$0xff]
    %v133 = vld [vmem:[#allocation2 + $0x208] sm:$0xff]
    %v134 = vld [vmem:[#allocation2 + $0x210] sm:$0xff]
    %v135 = vld [vmem:[#allocation2 + $0x218] sm:$0xff]
    %v136 = vld [vmem:[#allocation2 + $0x220] sm:$0xff]
    %v137 = vld [vmem:[#allocation2 + $0x228] sm:$0xff]
    %v138 = vld [vmem:[#allocation2 + $0x230] sm:$0xff]
    %v139 = vld [vmem:[#allocation2 + $0x238] sm:$0xff]
    %v140 = vld [vmem:[#allocation2 + $0x240] sm:$0xff]
    %v141 = vld [vmem:[#allocation2 + $0x248] sm:$0xff]
    %v142 = vld [vmem:[#allocation2 + $0x250] sm:$0xff]
    %v143 = vld [vmem:[#allocation2 + $0x258] sm:$0xff]
    %v144 = vld [vmem:[#allocation2 + $0x260] sm:$0xff]
    %v145 = vld [vmem:[#allocation2 + $0x268] sm:$0xff]
    %v146 = vld [vmem:[#allocation2 + $0x270] sm:$0xff]
    %v147 = vld [vmem:[#allocation2 + $0x278] sm:$0xff]
    %v148 = vld [vmem:[#allocation2 + $0x280] sm:$0xff]
    %v149 = vld [vmem:[#allocation2 + $0x288] sm:$0xff]
    %v150 = vld [vmem:[#allocation2 + $0x290] sm:$0xff]
    %v151 = vld [vmem:[#allocation2 + $0x298] sm:$0xff]
    %v152 = vld [vmem:[#allocation2 + $0x2a0] sm:$0xff]
    %v153 = vld [vmem:[#allocation2 + $0x2a8] sm:$0xff]
    %v154 = vld [vmem:[#allocation2 + $0x2b0] sm:$0xff]
    %v155 = vld [vmem:[#allocation2 + $0x2b8] sm:$0xff]
    %v156 = vld [vmem:[#allocation2 + $0x2c0] sm:$0xff]
    %v157 = vld [vmem:[#allocation2 + $0x2c8] sm:$0xff]
    %v158 = vld [vmem:[#allocation2 + $0x2d0] sm:$0xff]
    %v159 = vld [vmem:[#allocation2 + $0x2d8] sm:$0xff]
    %v160 = vld [vmem:[#allocation2 + $0x2e0] sm:$0xff]
    %v161 = vld [vmem:[#allocation2 + $0x2e8] sm:$0xff]
    %v162 = vld [vmem:[#allocation2 + $0x2f0] sm:$0xff]
    %v163 = vld [vmem:[#allocation2 + $0x2f8] sm:$0xff]
    %v164 = vld [vmem:[#allocation2 + $0x300] sm:$0xff]
    %v165 = vld [vmem:[#allocation2 + $0x308] sm:$0xff]
    %v166 = vld [vmem:[#allocation2 + $0x310] sm:$0xff]
    %v167 = vld [vmem:[#allocation2 + $0x318] sm:$0xff]
    %v168 = vld [vmem:[#allocation2 + $0x320] sm:$0xff]
    %v169 = vld [vmem:[#allocation2 + $0x328] sm:$0xff]
    %v170 = vld [vmem:[#allocation2 + $0x330] sm:$0xff]
    %v171 = vld [vmem:[#allocation2 + $0x338] sm:$0xff]
    %v172 = vld [vmem:[#allocation2 + $0x340] sm:$0xff]
    %v173 = vld [vmem:[#allocation2 + $0x348] sm:$0xff]
    %v174 = vld [vmem:[#allocation2 + $0x350] sm:$0xff]
    %v175 = vld [vmem:[#allocation2 + $0x358] sm:$0xff]
    %v176 = vld [vmem:[#allocation2 + $0x360] sm:$0xff]
    %v177 = vld [vmem:[#allocation2 + $0x368] sm:$0xff]
    %v178 = vld [vmem:[#allocation2 + $0x370] sm:$0xff]
    %v179 = vld [vmem:[#allocation2 + $0x378] sm:$0xff]
    %v180 = vld [vmem:[#allocation2 + $0x380] sm:$0xff]
    %v181 = vld [vmem:[#allocation2 + $0x388] sm:$0xff]
    %v182 = vld [vmem:[#allocation2 + $0x390] sm:$0xff]
    %v183 = vld [vmem:[#allocation2 + $0x398] sm:$0xff]
    %v184 = vld [vmem:[#allocation2 + $0x3a0] sm:$0xff]
    %v185 = vld [vmem:[#allocation2 + $0x3a8] sm:$0xff]
    %v186 = vld [vmem:[#allocation2 + $0x3b0] sm:$0xff]
    %v187 = vld [vmem:[#allocation2 + $0x3b8] sm:$0xff]
    %v188 = vld [vmem:[#allocation2 + $0x3c0] sm:$0xff]
    %v189 = vld [vmem:[#allocation2 + $0x3c8] sm:$0xff]
    %v190 = vld [vmem:[#allocation2 + $0x3d0] sm:$0xff]
    %v191 = vld [vmem:[#allocation2 + $0x3d8] sm:$0xff]
    %v192 = vld [vmem:[#allocation2 + $0x3e0] sm:$0xff]
    %v193 = vld [vmem:[#allocation2 + $0x3e8] sm:$0xff]
    %v194 = vld [vmem:[#allocation2 + $0x3f0] sm:$0xff]
    %v195 = vld [vmem:[#allocation2 + $0x3f8] sm:$0xff]
    %v196 = vld [vmem:[%s2] sm:$0xf]
    %v198 = vlaneseq
    %v199 = vshrl.u32 %v198, 7
    %v200 = vsub.s32 0, %v199
    %v201 = vrot.slane %v67, %v200
    %v202 = vlaneseq
    %v203 = vshrl.u32 %v202, 7
    %v204 = vsub.s32 1, %v203
    %v205 = vrot.slane %v67, %v204
    %v209 = vlaneseq
    %v210 = vshrl.u32 %v209, 7
    %v211 = vsub.s32 0, %v210
    %v212 = vrot.slane %v196, %v211
    %v213 = vlaneseq
    %v214 = vshrl.u32 %v213, 7
    %v215 = vsub.s32 1, %v214
    %v216 = vrot.slane %v196, %v215
    %v217 = vlaneseq
    %v218 = vshrl.u32 %v217, 7
    %v219 = vsub.s32 2, %v218
    %v220 = vrot.slane %v196, %v219
    %v221 = vlaneseq
    %v222 = vshrl.u32 %v221, 7
    %v223 = vsub.s32 3, %v222
    %v224 = vrot.slane %v196, %v223
    %229 = vmatprep.subr.mxu0 %v129
    %230 = vmatpush1.msra.mxu0 %v128
    %231 = vmatprep.subr.mxu0 %v125
    %232 = vmatpush1.msra.mxu0 %v124
    %233 = vmatprep.subr.mxu0 %v121
    %234 = vmatpush1.msra.mxu0 %v120
    %235 = vmatprep.subr.mxu0 %v117
    %236 = vmatpush1.msra.mxu0 %v116
    %237 = vmatprep.subr.mxu0 %v113
    %238 = vmatpush1.msra.mxu0 %v112
    %239 = vmatprep.subr.mxu0 %v109
    %240 = vmatpush1.msra.mxu0 %v108
    %241 = vmatprep.subr.mxu0 %v105
    %242 = vmatpush1.msra.mxu0 %v104
    %243 = vmatprep.subr.mxu0 %v101
    %244 = vmatpush1.msra.mxu0 %v100
    %245 = vmatprep.subr.mxu0 %v97
    %246 = vmatpush1.msra.mxu0 %v96
    %247 = vmatprep.subr.mxu0 %v93
    %248 = vmatpush1.msra.mxu0 %v92
    %249 = vmatprep.subr.mxu0 %v89
    %250 = vmatpush1.msra.mxu0 %v88
    %251 = vmatprep.subr.mxu0 %v85
    %252 = vmatpush1.msra.mxu0 %v84
    %253 = vmatprep.subr.mxu0 %v81
    %254 = vmatpush1.msra.mxu0 %v80
    %255 = vmatprep.subr.mxu0 %v77
    %256 = vmatpush1.msra.mxu0 %v76
    %257 = vmatprep.subr.mxu0 %v73
    %258 = vmatpush1.msra.mxu0 %v72
    %259 = vmatprep.subr.mxu0 %v69
    %260 = vmatpush1.msra.mxu0 %v68
    %261 = vmatprep.subr.mxu0 %v193
    %262 = vmatpush2.msra.mxu0 %v192
    %263 = vmatprep.subr.mxu0 %v189
    %264 = vmatpush2.msra.mxu0 %v188
    %265 = vmatprep.subr.mxu0 %v185
    %266 = vmatpush2.msra.mxu0 %v184
    %267 = vmatprep.subr.mxu0 %v181
    %268 = vmatpush2.msra.mxu0 %v180
    %269 = vmatprep.subr.mxu0 %v177
    %270 = vmatpush2.msra.mxu0 %v176
    %271 = vmatprep.subr.mxu0 %v173
    %272 = vmatpush2.msra.mxu0 %v172
    %273 = vmatprep.subr.mxu0 %v169
    %274 = vmatpush2.msra.mxu0 %v168
    %275 = vmatprep.subr.mxu0 %v165
    %276 = vmatpush2.msra.mxu0 %v164
    %277 = vmatprep.subr.mxu0 %v161
    %278 = vmatpush2.msra.mxu0 %v160
    %279 = vmatprep.subr.mxu0 %v157
    %280 = vmatpush2.msra.mxu0 %v156
    %281 = vmatprep.subr.mxu0 %v153
    %282 = vmatpush2.msra.mxu0 %v152
    %283 = vmatprep.subr.mxu0 %v149
    %284 = vmatpush2.msra.mxu0 %v148
    %285 = vmatprep.subr.mxu0 %v145
    %286 = vmatpush2.msra.mxu0 %v144
    %287 = vmatprep.subr.mxu0 %v141
    %288 = vmatpush2.msra.mxu0 %v140
    %289 = vmatprep.subr.mxu0 %v137
    %290 = vmatpush2.msra.mxu0 %v136
    %291 = vmatprep.subr.mxu0 %v133
    %292 = vmatpush2.msra.mxu0 %v132
    %293 = vmatprep.mubr.f32.mxu0 %v205
    %294 = vmatmul.mubr.f32.gmra.mxu0 %v201
    %v295 = vpop.f32.mrf.mxu0
    %v296 = vadd.f32 %v212, %v295
    %v297 = vpop.f32.mrf.mxu0
    %v298 = vadd.f32 %v216, %v297
    %299 = vdwg.mxu0
    %300 = vmatprep.subr.mxu0 %v131
    %301 = vmatpush1.msra.mxu0 %v130
    %302 = vmatprep.subr.mxu0 %v127
    %303 = vmatpush1.msra.mxu0 %v126
    %304 = vmatprep.subr.mxu0 %v123
    %305 = vmatpush1.msra.mxu0 %v122
    %306 = vmatprep.subr.mxu0 %v119
    %307 = vmatpush1.msra.mxu0 %v118
    %308 = vmatprep.subr.mxu0 %v115
    %309 = vmatpush1.msra.mxu0 %v114
    %310 = vmatprep.subr.mxu0 %v111
    %311 = vmatpush1.msra.mxu0 %v110
    %312 = vmatprep.subr.mxu0 %v107
    %313 = vmatpush1.msra.mxu0 %v106
    %314 = vmatprep.subr.mxu0 %v103
    %315 = vmatpush1.msra.mxu0 %v102
    %316 = vmatprep.subr.mxu0 %v99
    %317 = vmatpush1.msra.mxu0 %v98
    %318 = vmatprep.subr.mxu0 %v95
    %319 = vmatpush1.msra.mxu0 %v94
    %320 = vmatprep.subr.mxu0 %v91
    %321 = vmatpush1.msra.mxu0 %v90
    %322 = vmatprep.subr.mxu0 %v87
    %323 = vmatpush1.msra.mxu0 %v86
    %324 = vmatprep.subr.mxu0 %v83
    %325 = vmatpush1.msra.mxu0 %v82
    %326 = vmatprep.subr.mxu0 %v79
    %327 = vmatpush1.msra.mxu0 %v78
    %328 = vmatprep.subr.mxu0 %v75
    %329 = vmatpush1.msra.mxu0 %v74
    %330 = vmatprep.subr.mxu0 %v71
    %331 = vmatpush1.msra.mxu0 %v70
    %332 = vmatprep.subr.mxu0 %v195
    %333 = vmatpush2.msra.mxu0 %v194
    %334 = vmatprep.subr.mxu0 %v191
    %335 = vmatpush2.msra.mxu0 %v190
    %336 = vmatprep.subr.mxu0 %v187
    %337 = vmatpush2.msra.mxu0 %v186
    %338 = vmatprep.subr.mxu0 %v183
    %339 = vmatpush2.msra.mxu0 %v182
    %340 = vmatprep.subr.mxu0 %v179
    %341 = vmatpush2.msra.mxu0 %v178
    %342 = vmatprep.subr.mxu0 %v175
    %343 = vmatpush2.msra.mxu0 %v174
    %344 = vmatprep.subr.mxu0 %v171
    %345 = vmatpush2.msra.mxu0 %v170
    %346 = vmatprep.subr.mxu0 %v167
    %347 = vmatpush2.msra.mxu0 %v166
    %348 = vmatprep.subr.mxu0 %v163
    %349 = vmatpush2.msra.mxu0 %v162
    %350 = vmatprep.subr.mxu0 %v159
    %351 = vmatpush2.msra.mxu0 %v158
    %352 = vmatprep.subr.mxu0 %v155
    %353 = vmatpush2.msra.mxu0 %v154
    %354 = vmatprep.subr.mxu0 %v151
    %355 = vmatpush2.msra.mxu0 %v150
    %356 = vmatprep.subr.mxu0 %v147
    %357 = vmatpush2.msra.mxu0 %v146
    %358 = vmatprep.subr.mxu0 %v143
    %359 = vmatpush2.msra.mxu0 %v142
    %360 = vmatprep.subr.mxu0 %v139
    %361 = vmatpush2.msra.mxu0 %v138
    %362 = vmatprep.subr.mxu0 %v135
    %363 = vmatpush2.msra.mxu0 %v134
    %364 = vmatprep.mubr.f32.mxu0 %v205
    %365 = vmatmul.mubr.f32.gmra.mxu0 %v201
    %v366 = vpop.f32.mrf.mxu0
    %v367 = vadd.f32 %v220, %v366
    %v368 = vpop.f32.mrf.mxu0
    %v369 = vadd.f32 %v224, %v368
    %370 = vdwg.mxu0
    %v371 = vmax.f32 %v296, 0.0
    %v372 = vmax.f32 %v298, 0.0
    %v373 = vmax.f32 %v367, 0.0
    %v374 = vmax.f32 %v369, 0.0
    %v375 = vld [vmem:[#allocation4] sm:$0xff]
    %v376 = vld [vmem:[#allocation4 + $0x8] sm:$0xff]
    %v377 = vld [vmem:[#allocation4 + $0x10] sm:$0xff]
    %v378 = vld [vmem:[#allocation4 + $0x18] sm:$0xff]
    %v379 = vld [vmem:[#allocation4 + $0x20] sm:$0xff]
    %v380 = vld [vmem:[#allocation4 + $0x28] sm:$0xff]
    %v381 = vld [vmem:[#allocation4 + $0x30] sm:$0xff]
    %v382 = vld [vmem:[#allocation4 + $0x38] sm:$0xff]
    %v383 = vld [vmem:[#allocation4 + $0x40] sm:$0xff]
    %v384 = vld [vmem:[#allocation4 + $0x48] sm:$0xff]
    %v385 = vld [vmem:[#allocation4 + $0x50] sm:$0xff]
    %v386 = vld [vmem:[#allocation4 + $0x58] sm:$0xff]
    %v387 = vld [vmem:[#allocation4 + $0x60] sm:$0xff]
    %v388 = vld [vmem:[#allocation4 + $0x68] sm:$0xff]
    %v389 = vld [vmem:[#allocation4 + $0x70] sm:$0xff]
    %v390 = vld [vmem:[#allocation4 + $0x78] sm:$0xff]
    %v391 = vld [vmem:[#allocation4 + $0x80] sm:$0xff]
    %v392 = vld [vmem:[#allocation4 + $0x88] sm:$0xff]
    %v393 = vld [vmem:[#allocation4 + $0x90] sm:$0xff]
    %v394 = vld [vmem:[#allocation4 + $0x98] sm:$0xff]
    %v395 = vld [vmem:[#allocation4 + $0xa0] sm:$0xff]
    %v396 = vld [vmem:[#allocation4 + $0xa8] sm:$0xff]
    %v397 = vld [vmem:[#allocation4 + $0xb0] sm:$0xff]
    %v398 = vld [vmem:[#allocation4 + $0xb8] sm:$0xff]
    %v399 = vld [vmem:[#allocation4 + $0xc0] sm:$0xff]
    %v400 = vld [vmem:[#allocation4 + $0xc8] sm:$0xff]
    %v401 = vld [vmem:[#allocation4 + $0xd0] sm:$0xff]
    %v402 = vld [vmem:[#allocation4 + $0xd8] sm:$0xff]
    %v403 = vld [vmem:[#allocation4 + $0xe0] sm:$0xff]
    %v404 = vld [vmem:[#allocation4 + $0xe8] sm:$0xff]
    %v405 = vld [vmem:[#allocation4 + $0xf0] sm:$0xff]
    %v406 = vld [vmem:[#allocation4 + $0xf8] sm:$0xff]
    %v407 = vld [vmem:[#allocation4 + $0x100] sm:$0xff]
    %v408 = vld [vmem:[#allocation4 + $0x108] sm:$0xff]
    %v409 = vld [vmem:[#allocation4 + $0x110] sm:$0xff]
    %v410 = vld [vmem:[#allocation4 + $0x118] sm:$0xff]
    %v411 = vld [vmem:[#allocation4 + $0x120] sm:$0xff]
    %v412 = vld [vmem:[#allocation4 + $0x128] sm:$0xff]
    %v413 = vld [vmem:[#allocation4 + $0x130] sm:$0xff]
    %v414 = vld [vmem:[#allocation4 + $0x138] sm:$0xff]
    %v415 = vld [vmem:[#allocation4 + $0x140] sm:$0xff]
    %v416 = vld [vmem:[#allocation4 + $0x148] sm:$0xff]
    %v417 = vld [vmem:[#allocation4 + $0x150] sm:$0xff]
    %v418 = vld [vmem:[#allocation4 + $0x158] sm:$0xff]
    %v419 = vld [vmem:[#allocation4 + $0x160] sm:$0xff]
    %v420 = vld [vmem:[#allocation4 + $0x168] sm:$0xff]
    %v421 = vld [vmem:[#allocation4 + $0x170] sm:$0xff]
    %v422 = vld [vmem:[#allocation4 + $0x178] sm:$0xff]
    %v423 = vld [vmem:[#allocation4 + $0x180] sm:$0xff]
    %v424 = vld [vmem:[#allocation4 + $0x188] sm:$0xff]
    %v425 = vld [vmem:[#allocation4 + $0x190] sm:$0xff]
    %v426 = vld [vmem:[#allocation4 + $0x198] sm:$0xff]
    %v427 = vld [vmem:[#allocation4 + $0x1a0] sm:$0xff]
    %v428 = vld [vmem:[#allocation4 + $0x1a8] sm:$0xff]
    %v429 = vld [vmem:[#allocation4 + $0x1b0] sm:$0xff]
    %v430 = vld [vmem:[#allocation4 + $0x1b8] sm:$0xff]
    %v431 = vld [vmem:[#allocation4 + $0x1c0] sm:$0xff]
    %v432 = vld [vmem:[#allocation4 + $0x1c8] sm:$0xff]
    %v433 = vld [vmem:[#allocation4 + $0x1d0] sm:$0xff]
    %v434 = vld [vmem:[#allocation4 + $0x1d8] sm:$0xff]
    %v435 = vld [vmem:[#allocation4 + $0x1e0] sm:$0xff]
    %v436 = vld [vmem:[#allocation4 + $0x1e8] sm:$0xff]
    %v437 = vld [vmem:[#allocation4 + $0x1f0] sm:$0xff]
    %v438 = vld [vmem:[#allocation4 + $0x1f8] sm:$0xff]
    %v439 = vld [vmem:[#allocation4 + $0x200] sm:$0xff]
    %v440 = vld [vmem:[#allocation4 + $0x208] sm:$0xff]
    %v441 = vld [vmem:[#allocation4 + $0x210] sm:$0xff]
    %v442 = vld [vmem:[#allocation4 + $0x218] sm:$0xff]
    %v443 = vld [vmem:[#allocation4 + $0x220] sm:$0xff]
    %v444 = vld [vmem:[#allocation4 + $0x228] sm:$0xff]
    %v445 = vld [vmem:[#allocation4 + $0x230] sm:$0xff]
    %v446 = vld [vmem:[#allocation4 + $0x238] sm:$0xff]
    %v447 = vld [vmem:[#allocation4 + $0x240] sm:$0xff]
    %v448 = vld [vmem:[#allocation4 + $0x248] sm:$0xff]
    %v449 = vld [vmem:[#allocation4 + $0x250] sm:$0xff]
    %v450 = vld [vmem:[#allocation4 + $0x258] sm:$0xff]
    %v451 = vld [vmem:[#allocation4 + $0x260] sm:$0xff]
    %v452 = vld [vmem:[#allocation4 + $0x268] sm:$0xff]
    %v453 = vld [vmem:[#allocation4 + $0x270] sm:$0xff]
    %v454 = vld [vmem:[#allocation4 + $0x278] sm:$0xff]
    %v455 = vld [vmem:[#allocation4 + $0x280] sm:$0xff]
    %v456 = vld [vmem:[#allocation4 + $0x288] sm:$0xff]
    %v457 = vld [vmem:[#allocation4 + $0x290] sm:$0xff]
    %v458 = vld [vmem:[#allocation4 + $0x298] sm:$0xff]
    %v459 = vld [vmem:[#allocation4 + $0x2a0] sm:$0xff]
    %v460 = vld [vmem:[#allocation4 + $0x2a8] sm:$0xff]
    %v461 = vld [vmem:[#allocation4 + $0x2b0] sm:$0xff]
    %v462 = vld [vmem:[#allocation4 + $0x2b8] sm:$0xff]
    %v463 = vld [vmem:[#allocation4 + $0x2c0] sm:$0xff]
    %v464 = vld [vmem:[#allocation4 + $0x2c8] sm:$0xff]
    %v465 = vld [vmem:[#allocation4 + $0x2d0] sm:$0xff]
    %v466 = vld [vmem:[#allocation4 + $0x2d8] sm:$0xff]
    %v467 = vld [vmem:[#allocation4 + $0x2e0] sm:$0xff]
    %v468 = vld [vmem:[#allocation4 + $0x2e8] sm:$0xff]
    %v469 = vld [vmem:[#allocation4 + $0x2f0] sm:$0xff]
    %v470 = vld [vmem:[#allocation4 + $0x2f8] sm:$0xff]
    %v471 = vld [vmem:[#allocation4 + $0x300] sm:$0xff]
    %v472 = vld [vmem:[#allocation4 + $0x308] sm:$0xff]
    %v473 = vld [vmem:[#allocation4 + $0x310] sm:$0xff]
    %v474 = vld [vmem:[#allocation4 + $0x318] sm:$0xff]
    %v475 = vld [vmem:[#allocation4 + $0x320] sm:$0xff]
    %v476 = vld [vmem:[#allocation4 + $0x328] sm:$0xff]
    %v477 = vld [vmem:[#allocation4 + $0x330] sm:$0xff]
    %v478 = vld [vmem:[#allocation4 + $0x338] sm:$0xff]
    %v479 = vld [vmem:[#allocation4 + $0x340] sm:$0xff]
    %v480 = vld [vmem:[#allocation4 + $0x348] sm:$0xff]
    %v481 = vld [vmem:[#allocation4 + $0x350] sm:$0xff]
    %v482 = vld [vmem:[#allocation4 + $0x358] sm:$0xff]
    %v483 = vld [vmem:[#allocation4 + $0x360] sm:$0xff]
    %v484 = vld [vmem:[#allocation4 + $0x368] sm:$0xff]
    %v485 = vld [vmem:[#allocation4 + $0x370] sm:$0xff]
    %v486 = vld [vmem:[#allocation4 + $0x378] sm:$0xff]
    %v487 = vld [vmem:[#allocation4 + $0x380] sm:$0xff]
    %v488 = vld [vmem:[#allocation4 + $0x388] sm:$0xff]
    %v489 = vld [vmem:[#allocation4 + $0x390] sm:$0xff]
    %v490 = vld [vmem:[#allocation4 + $0x398] sm:$0xff]
    %v491 = vld [vmem:[#allocation4 + $0x3a0] sm:$0xff]
    %v492 = vld [vmem:[#allocation4 + $0x3a8] sm:$0xff]
    %v493 = vld [vmem:[#allocation4 + $0x3b0] sm:$0xff]
    %v494 = vld [vmem:[#allocation4 + $0x3b8] sm:$0xff]
    %v495 = vld [vmem:[#allocation4 + $0x3c0] sm:$0xff]
    %v496 = vld [vmem:[#allocation4 + $0x3c8] sm:$0xff]
    %v497 = vld [vmem:[#allocation4 + $0x3d0] sm:$0xff]
    %v498 = vld [vmem:[#allocation4 + $0x3d8] sm:$0xff]
    %v499 = vld [vmem:[#allocation4 + $0x3e0] sm:$0xff]
    %v500 = vld [vmem:[#allocation4 + $0x3e8] sm:$0xff]
    %v501 = vld [vmem:[#allocation4 + $0x3f0] sm:$0xff]
    %v502 = vld [vmem:[#allocation4 + $0x3f8] sm:$0xff]
    %v503 = vld [vmem:[#allocation4 + $0x400] sm:$0xff]
    %v504 = vld [vmem:[#allocation4 + $0x408] sm:$0xff]
    %v505 = vld [vmem:[#allocation4 + $0x410] sm:$0xff]
    %v506 = vld [vmem:[#allocation4 + $0x418] sm:$0xff]
    %v507 = vld [vmem:[#allocation4 + $0x420] sm:$0xff]
    %v508 = vld [vmem:[#allocation4 + $0x428] sm:$0xff]
    %v509 = vld [vmem:[#allocation4 + $0x430] sm:$0xff]
    %v510 = vld [vmem:[#allocation4 + $0x438] sm:$0xff]
    %v511 = vld [vmem:[#allocation4 + $0x440] sm:$0xff]
    %v512 = vld [vmem:[#allocation4 + $0x448] sm:$0xff]
    %v513 = vld [vmem:[#allocation4 + $0x450] sm:$0xff]
    %v514 = vld [vmem:[#allocation4 + $0x458] sm:$0xff]
    %v515 = vld [vmem:[#allocation4 + $0x460] sm:$0xff]
    %v516 = vld [vmem:[#allocation4 + $0x468] sm:$0xff]
    %v517 = vld [vmem:[#allocation4 + $0x470] sm:$0xff]
    %v518 = vld [vmem:[#allocation4 + $0x478] sm:$0xff]
    %v519 = vld [vmem:[#allocation4 + $0x480] sm:$0xff]
    %v520 = vld [vmem:[#allocation4 + $0x488] sm:$0xff]
    %v521 = vld [vmem:[#allocation4 + $0x490] sm:$0xff]
    %v522 = vld [vmem:[#allocation4 + $0x498] sm:$0xff]
    %v523 = vld [vmem:[#allocation4 + $0x4a0] sm:$0xff]
    %v524 = vld [vmem:[#allocation4 + $0x4a8] sm:$0xff]
    %v525 = vld [vmem:[#allocation4 + $0x4b0] sm:$0xff]
    %v526 = vld [vmem:[#allocation4 + $0x4b8] sm:$0xff]
    %v527 = vld [vmem:[#allocation4 + $0x4c0] sm:$0xff]
    %v528 = vld [vmem:[#allocation4 + $0x4c8] sm:$0xff]
    %v529 = vld [vmem:[#allocation4 + $0x4d0] sm:$0xff]
    %v530 = vld [vmem:[#allocation4 + $0x4d8] sm:$0xff]
    %v531 = vld [vmem:[#allocation4 + $0x4e0] sm:$0xff]
    %v532 = vld [vmem:[#allocation4 + $0x4e8] sm:$0xff]
    %v533 = vld [vmem:[#allocation4 + $0x4f0] sm:$0xff]
    %v534 = vld [vmem:[#allocation4 + $0x4f8] sm:$0xff]
    %v535 = vld [vmem:[#allocation4 + $0x500] sm:$0xff]
    %v536 = vld [vmem:[#allocation4 + $0x508] sm:$0xff]
    %v537 = vld [vmem:[#allocation4 + $0x510] sm:$0xff]
    %v538 = vld [vmem:[#allocation4 + $0x518] sm:$0xff]
    %v539 = vld [vmem:[#allocation4 + $0x520] sm:$0xff]
    %v540 = vld [vmem:[#allocation4 + $0x528] sm:$0xff]
    %v541 = vld [vmem:[#allocation4 + $0x530] sm:$0xff]
    %v542 = vld [vmem:[#allocation4 + $0x538] sm:$0xff]
    %v543 = vld [vmem:[#allocation4 + $0x540] sm:$0xff]
    %v544 = vld [vmem:[#allocation4 + $0x548] sm:$0xff]
    %v545 = vld [vmem:[#allocation4 + $0x550] sm:$0xff]
    %v546 = vld [vmem:[#allocation4 + $0x558] sm:$0xff]
    %v547 = vld [vmem:[#allocation4 + $0x560] sm:$0xff]
    %v548 = vld [vmem:[#allocation4 + $0x568] sm:$0xff]
    %v549 = vld [vmem:[#allocation4 + $0x570] sm:$0xff]
    %v550 = vld [vmem:[#allocation4 + $0x578] sm:$0xff]
    %v551 = vld [vmem:[#allocation4 + $0x580] sm:$0xff]
    %v552 = vld [vmem:[#allocation4 + $0x588] sm:$0xff]
    %v553 = vld [vmem:[#allocation4 + $0x590] sm:$0xff]
    %v554 = vld [vmem:[#allocation4 + $0x598] sm:$0xff]
    %v555 = vld [vmem:[#allocation4 + $0x5a0] sm:$0xff]
    %v556 = vld [vmem:[#allocation4 + $0x5a8] sm:$0xff]
    %v557 = vld [vmem:[#allocation4 + $0x5b0] sm:$0xff]
    %v558 = vld [vmem:[#allocation4 + $0x5b8] sm:$0xff]
    %v559 = vld [vmem:[#allocation4 + $0x5c0] sm:$0xff]
    %v560 = vld [vmem:[#allocation4 + $0x5c8] sm:$0xff]
    %v561 = vld [vmem:[#allocation4 + $0x5d0] sm:$0xff]
    %v562 = vld [vmem:[#allocation4 + $0x5d8] sm:$0xff]
    %v563 = vld [vmem:[#allocation4 + $0x5e0] sm:$0xff]
    %v564 = vld [vmem:[#allocation4 + $0x5e8] sm:$0xff]
    %v565 = vld [vmem:[#allocation4 + $0x5f0] sm:$0xff]
    %v566 = vld [vmem:[#allocation4 + $0x5f8] sm:$0xff]
    %v567 = vld [vmem:[%s4] sm:$0x7]
    %v569 = vlaneseq
    %v570 = vshrl.u32 %v569, 7
    %v571 = vsub.s32 0, %v570
    %v572 = vrot.slane %v567, %v571
    %v573 = vlaneseq
    %v574 = vshrl.u32 %v573, 7
    %v575 = vsub.s32 1, %v574
    %v576 = vrot.slane %v567, %v575
    %v577 = vlaneseq
    %v578 = vshrl.u32 %v577, 7
    %v579 = vsub.s32 2, %v578
    %v580 = vrot.slane %v567, %v579
    %584 = vmatprep.subr.mxu0 %v421
    %585 = vmatpush1.msra.mxu0 %v420
    %586 = vmatprep.subr.mxu0 %v418
    %587 = vmatpush1.msra.mxu0 %v417
    %588 = vmatprep.subr.mxu0 %v415
    %589 = vmatpush1.msra.mxu0 %v414
    %590 = vmatprep.subr.mxu0 %v412
    %591 = vmatpush1.msra.mxu0 %v411
    %592 = vmatprep.subr.mxu0 %v409
    %593 = vmatpush1.msra.mxu0 %v408
    %594 = vmatprep.subr.mxu0 %v406
    %595 = vmatpush1.msra.mxu0 %v405
    %596 = vmatprep.subr.mxu0 %v403
    %597 = vmatpush1.msra.mxu0 %v402
    %598 = vmatprep.subr.mxu0 %v400
    %599 = vmatpush1.msra.mxu0 %v399
    %600 = vmatprep.subr.mxu0 %v397
    %601 = vmatpush1.msra.mxu0 %v396
    %602 = vmatprep.subr.mxu0 %v394
    %603 = vmatpush1.msra.mxu0 %v393
    %604 = vmatprep.subr.mxu0 %v391
    %605 = vmatpush1.msra.mxu0 %v390
    %606 = vmatprep.subr.mxu0 %v388
    %607 = vmatpush1.msra.mxu0 %v387
    %608 = vmatprep.subr.mxu0 %v385
    %609 = vmatpush1.msra.mxu0 %v384
    %610 = vmatprep.subr.mxu0 %v382
    %611 = vmatpush1.msra.mxu0 %v381
    %612 = vmatprep.subr.mxu0 %v379
    %613 = vmatpush1.msra.mxu0 %v378
    %614 = vmatprep.subr.mxu0 %v376
    %615 = vmatpush1.msra.mxu0 %v375
    %616 = vmatprep.subr.mxu0 %v469
    %617 = vmatpush2.msra.mxu0 %v468
    %618 = vmatprep.subr.mxu0 %v466
    %619 = vmatpush2.msra.mxu0 %v465
    %620 = vmatprep.subr.mxu0 %v463
    %621 = vmatpush2.msra.mxu0 %v462
    %622 = vmatprep.subr.mxu0 %v460
    %623 = vmatpush2.msra.mxu0 %v459
    %624 = vmatprep.subr.mxu0 %v457
    %625 = vmatpush2.msra.mxu0 %v456
    %626 = vmatprep.subr.mxu0 %v454
    %627 = vmatpush2.msra.mxu0 %v453
    %628 = vmatprep.subr.mxu0 %v451
    %629 = vmatpush2.msra.mxu0 %v450
    %630 = vmatprep.subr.mxu0 %v448
    %631 = vmatpush2.msra.mxu0 %v447
    %632 = vmatprep.subr.mxu0 %v445
    %633 = vmatpush2.msra.mxu0 %v444
    %634 = vmatprep.subr.mxu0 %v442
    %635 = vmatpush2.msra.mxu0 %v441
    %636 = vmatprep.subr.mxu0 %v439
    %637 = vmatpush2.msra.mxu0 %v438
    %638 = vmatprep.subr.mxu0 %v436
    %639 = vmatpush2.msra.mxu0 %v435
    %640 = vmatprep.subr.mxu0 %v433
    %641 = vmatpush2.msra.mxu0 %v432
    %642 = vmatprep.subr.mxu0 %v430
    %643 = vmatpush2.msra.mxu0 %v429
    %644 = vmatprep.subr.mxu0 %v427
    %645 = vmatpush2.msra.mxu0 %v426
    %646 = vmatprep.subr.mxu0 %v424
    %647 = vmatpush2.msra.mxu0 %v423
    %648 = vmatprep.mubr.f32.mxu0 %v372
    %649 = vmatmul.mubr.f32.gmra.mxu0 %v371
    %v650 = vpop.f32.mrf.mxu0
    %v651 = vadd.f32 %v572, %v650
    %v652 = vpop.f32.mrf.mxu0
    %v653 = vadd.f32 %v576, %v652
    %654 = vdwg.mxu0
    %655 = vmatprep.subr.mxu0 %v517
    %656 = vmatpush1.msra.mxu0 %v516
    %657 = vmatprep.subr.mxu0 %v514
    %658 = vmatpush1.msra.mxu0 %v513
    %659 = vmatprep.subr.mxu0 %v511
    %660 = vmatpush1.msra.mxu0 %v510
    %661 = vmatprep.subr.mxu0 %v508
    %662 = vmatpush1.msra.mxu0 %v507
    %663 = vmatprep.subr.mxu0 %v505
    %664 = vmatpush1.msra.mxu0 %v504
    %665 = vmatprep.subr.mxu0 %v502
    %666 = vmatpush1.msra.mxu0 %v501
    %667 = vmatprep.subr.mxu0 %v499
    %668 = vmatpush1.msra.mxu0 %v498
    %669 = vmatprep.subr.mxu0 %v496
    %670 = vmatpush1.msra.mxu0 %v495
    %671 = vmatprep.subr.mxu0 %v493
    %672 = vmatpush1.msra.mxu0 %v492
    %673 = vmatprep.subr.mxu0 %v490
    %674 = vmatpush1.msra.mxu0 %v489
    %675 = vmatprep.subr.mxu0 %v487
    %676 = vmatpush1.msra.mxu0 %v486
    %677 = vmatprep.subr.mxu0 %v484
    %678 = vmatpush1.msra.mxu0 %v483
    %679 = vmatprep.subr.mxu0 %v481
    %680 = vmatpush1.msra.mxu0 %v480
    %681 = vmatprep.subr.mxu0 %v478
    %682 = vmatpush1.msra.mxu0 %v477
    %683 = vmatprep.subr.mxu0 %v475
    %684 = vmatpush1.msra.mxu0 %v474
    %685 = vmatprep.subr.mxu0 %v472
    %686 = vmatpush1.msra.mxu0 %v471
    %687 = vmatprep.subr.mxu0 %v565
    %688 = vmatpush2.msra.mxu0 %v564
    %689 = vmatprep.subr.mxu0 %v562
    %690 = vmatpush2.msra.mxu0 %v561
    %691 = vmatprep.subr.mxu0 %v559
    %692 = vmatpush2.msra.mxu0 %v558
    %693 = vmatprep.subr.mxu0 %v556
    %694 = vmatpush2.msra.mxu0 %v555
    %695 = vmatprep.subr.mxu0 %v553
    %696 = vmatpush2.msra.mxu0 %v552
    %697 = vmatprep.subr.mxu0 %v550
    %698 = vmatpush2.msra.mxu0 %v549
    %699 = vmatprep.subr.mxu0 %v547
    %700 = vmatpush2.msra.mxu0 %v546
    %701 = vmatprep.subr.mxu0 %v544
    %702 = vmatpush2.msra.mxu0 %v543
    %703 = vmatprep.subr.mxu0 %v541
    %704 = vmatpush2.msra.mxu0 %v540
    %705 = vmatprep.subr.mxu0 %v538
    %706 = vmatpush2.msra.mxu0 %v537
    %707 = vmatprep.subr.mxu0 %v535
    %708 = vmatpush2.msra.mxu0 %v534
    %709 = vmatprep.subr.mxu0 %v532
    %710 = vmatpush2.msra.mxu0 %v531
    %711 = vmatprep.subr.mxu0 %v529
    %712 = vmatpush2.msra.mxu0 %v528
    %713 = vmatprep.subr.mxu0 %v526
    %714 = vmatpush2.msra.mxu0 %v525
    %715 = vmatprep.subr.mxu0 %v523
    %716 = vmatpush2.msra.mxu0 %v522
    %717 = vmatprep.subr.mxu0 %v520
    %718 = vmatpush2.msra.mxu0 %v519
    %719 = vmatprep.mubr.f32.mxu0 %v374
    %720 = vmatmul.mubr.f32.gmra.mxu0 %v373
    %v721 = vpop.f32.mrf.mxu0
    %v722 = vadd.f32 %v651, %v721
    %v723 = vpop.f32.mrf.mxu0
    %v724 = vadd.f32 %v653, %v723
    %725 = vdwg.mxu0
    %726 = vmatprep.subr.mxu0 0.0
    %727 = vmatpush1.msra.mxu0 %v422
    %728 = vmatprep.subr.mxu0 0.0
    %729 = vmatpush1.msra.mxu0 %v419
    %730 = vmatprep.subr.mxu0 0.0
    %731 = vmatpush1.msra.mxu0 %v416
    %732 = vmatprep.subr.mxu0 0.0
    %733 = vmatpush1.msra.mxu0 %v413
    %734 = vmatprep.subr.mxu0 0.0
    %735 = vmatpush1.msra.mxu0 %v410
    %736 = vmatprep.subr.mxu0 0.0
    %737 = vmatpush1.msra.mxu0 %v407
    %738 = vmatprep.subr.mxu0 0.0
    %739 = vmatpush1.msra.mxu0 %v404
    %740 = vmatprep.subr.mxu0 0.0
    %741 = vmatpush1.msra.mxu0 %v401
    %742 = vmatprep.subr.mxu0 0.0
    %743 = vmatpush1.msra.mxu0 %v398
    %744 = vmatprep.subr.mxu0 0.0
    %745 = vmatpush1.msra.mxu0 %v395
    %746 = vmatprep.subr.mxu0 0.0
    %747 = vmatpush1.msra.mxu0 %v392
    %748 = vmatprep.subr.mxu0 0.0
    %749 = vmatpush1.msra.mxu0 %v389
    %750 = vmatprep.subr.mxu0 0.0
    %751 = vmatpush1.msra.mxu0 %v386
    %752 = vmatprep.subr.mxu0 0.0
    %753 = vmatpush1.msra.mxu0 %v383
    %754 = vmatprep.subr.mxu0 0.0
    %755 = vmatpush1.msra.mxu0 %v380
    %756 = vmatprep.subr.mxu0 0.0
    %757 = vmatpush1.msra.mxu0 %v377
    %758 = vmatprep.subr.mxu0 0.0
    %759 = vmatpush2.msra.mxu0 %v470
    %760 = vmatprep.subr.mxu0 0.0
    %761 = vmatpush2.msra.mxu0 %v467
    %762 = vmatprep.subr.mxu0 0.0
    %763 = vmatpush2.msra.mxu0 %v464
    %764 = vmatprep.subr.mxu0 0.0
    %765 = vmatpush2.msra.mxu0 %v461
    %766 = vmatprep.subr.mxu0 0.0
    %767 = vmatpush2.msra.mxu0 %v458
    %768 = vmatprep.subr.mxu0 0.0
    %769 = vmatpush2.msra.mxu0 %v455
    %770 = vmatprep.subr.mxu0 0.0
    %771 = vmatpush2.msra.mxu0 %v452
    %772 = vmatprep.subr.mxu0 0.0
    %773 = vmatpush2.msra.mxu0 %v449
    %774 = vmatprep.subr.mxu0 0.0
    %775 = vmatpush2.msra.mxu0 %v446
    %776 = vmatprep.subr.mxu0 0.0
    %777 = vmatpush2.msra.mxu0 %v443
    %778 = vmatprep.subr.mxu0 0.0
    %779 = vmatpush2.msra.mxu0 %v440
    %780 = vmatprep.subr.mxu0 0.0
    %781 = vmatpush2.msra.mxu0 %v437
    %782 = vmatprep.subr.mxu0 0.0
    %783 = vmatpush2.msra.mxu0 %v434
    %784 = vmatprep.subr.mxu0 0.0
    %785 = vmatpush2.msra.mxu0 %v431
    %786 = vmatprep.subr.mxu0 0.0
    %787 = vmatpush2.msra.mxu0 %v428
    %788 = vmatprep.subr.mxu0 0.0
    %789 = vmatpush2.msra.mxu0 %v425
    %790 = vmatprep.mubr.f32.mxu0 %v372
    %791 = vmatmul.mubr.f32.gmra.mxu0 %v371
    %v792 = vpop.f32.mrf.mxu0
    %v793 = vadd.f32 %v580, %v792
    %v794 = vpop.f32.mrf.mxu0
    %795 = vdwg.mxu0
    %796 = vmatprep.subr.mxu0 0.0
    %797 = vmatpush1.msra.mxu0 %v518
    %798 = vmatprep.subr.mxu0 0.0
    %799 = vmatpush1.msra.mxu0 %v515
    %800 = vmatprep.subr.mxu0 0.0
    %801 = vmatpush1.msra.mxu0 %v512
    %802 = vmatprep.subr.mxu0 0.0
    %803 = vmatpush1.msra.mxu0 %v509
    %804 = vmatprep.subr.mxu0 0.0
    %805 = vmatpush1.msra.mxu0 %v506
    %806 = vmatprep.subr.mxu0 0.0
    %807 = vmatpush1.msra.mxu0 %v503
    %808 = vmatprep.subr.mxu0 0.0
    %809 = vmatpush1.msra.mxu0 %v500
    %810 = vmatprep.subr.mxu0 0.0
    %811 = vmatpush1.msra.mxu0 %v497
    %812 = vmatprep.subr.mxu0 0.0
    %813 = vmatpush1.msra.mxu0 %v494
    %814 = vmatprep.subr.mxu0 0.0
    %815 = vmatpush1.msra.mxu0 %v491
    %816 = vmatprep.subr.mxu0 0.0
    %817 = vmatpush1.msra.mxu0 %v488
    %818 = vmatprep.subr.mxu0 0.0
    %819 = vmatpush1.msra.mxu0 %v485
    %820 = vmatprep.subr.mxu0 0.0
    %821 = vmatpush1.msra.mxu0 %v482
    %822 = vmatprep.subr.mxu0 0.0
    %823 = vmatpush1.msra.mxu0 %v479
    %824 = vmatprep.subr.mxu0 0.0
    %825 = vmatpush1.msra.mxu0 %v476
    %826 = vmatprep.subr.mxu0 0.0
    %827 = vmatpush1.msra.mxu0 %v473
    %828 = vmatprep.subr.mxu0 0.0
    %829 = vmatpush2.msra.mxu0 %v566
    %830 = vmatprep.subr.mxu0 0.0
    %831 = vmatpush2.msra.mxu0 %v563
    %832 = vmatprep.subr.mxu0 0.0
    %833 = vmatpush2.msra.mxu0 %v560
    %834 = vmatprep.subr.mxu0 0.0
    %835 = vmatpush2.msra.mxu0 %v557
    %836 = vmatprep.subr.mxu0 0.0
    %837 = vmatpush2.msra.mxu0 %v554
    %838 = vmatprep.subr.mxu0 0.0
    %839 = vmatpush2.msra.mxu0 %v551
    %840 = vmatprep.subr.mxu0 0.0
    %841 = vmatpush2.msra.mxu0 %v548
    %842 = vmatprep.subr.mxu0 0.0
    %843 = vmatpush2.msra.mxu0 %v545
    %844 = vmatprep.subr.mxu0 0.0
    %845 = vmatpush2.msra.mxu0 %v542
    %846 = vmatprep.subr.mxu0 0.0
    %847 = vmatpush2.msra.mxu0 %v539
    %848 = vmatprep.subr.mxu0 0.0
    %849 = vmatpush2.msra.mxu0 %v536
    %850 = vmatprep.subr.mxu0 0.0
    %851 = vmatpush2.msra.mxu0 %v533
    %852 = vmatprep.subr.mxu0 0.0
    %853 = vmatpush2.msra.mxu0 %v530
    %854 = vmatprep.subr.mxu0 0.0
    %855 = vmatpush2.msra.mxu0 %v527
    %856 = vmatprep.subr.mxu0 0.0
    %857 = vmatpush2.msra.mxu0 %v524
    %858 = vmatprep.subr.mxu0 0.0
    %859 = vmatpush2.msra.mxu0 %v521
    %860 = vmatprep.mubr.f32.mxu0 %v374
    %861 = vmatmul.mubr.f32.gmra.mxu0 %v373
    %v862 = vpop.f32.mrf.mxu0
    %v863 = vadd.f32 %v793, %v862
    %v864 = vpop.f32.mrf.mxu0
    %865 = vdwg.mxu0
    %v866 = vmax.f32 %v722, 0.0
    %v867 = vmax.f32 %v724, 0.0
    %v868 = vmax.f32 %v863, 0.0
    %v869 = vld [vmem:[#allocation6] sm:$0xff]
    %v870 = vld [vmem:[#allocation6 + $0x8] sm:$0xff]
    %v871 = vld [vmem:[#allocation6 + $0x10] sm:$0xff]
    %v872 = vld [vmem:[#allocation6 + $0x18] sm:$0xff]
    %v873 = vld [vmem:[#allocation6 + $0x20] sm:$0xff]
    %v874 = vld [vmem:[#allocation6 + $0x28] sm:$0xff]
    %v875 = vld [vmem:[#allocation6 + $0x30] sm:$0xff]
    %v876 = vld [vmem:[#allocation6 + $0x38] sm:$0xff]
    %v877 = vld [vmem:[#allocation6 + $0x40] sm:$0xff]
    %v878 = vld [vmem:[#allocation6 + $0x48] sm:$0xff]
    %v879 = vld [vmem:[#allocation6 + $0x50] sm:$0xff]
    %v880 = vld [vmem:[#allocation6 + $0x58] sm:$0xff]
    %v881 = vld [vmem:[#allocation6 + $0x60] sm:$0xff]
    %v882 = vld [vmem:[#allocation6 + $0x68] sm:$0xff]
    %v883 = vld [vmem:[#allocation6 + $0x70] sm:$0xff]
    %v884 = vld [vmem:[#allocation6 + $0x78] sm:$0xff]
    %v885 = vld [vmem:[#allocation6 + $0x80] sm:$0xff]
    %v886 = vld [vmem:[#allocation6 + $0x88] sm:$0xff]
    %v887 = vld [vmem:[#allocation6 + $0x90] sm:$0xff]
    %v888 = vld [vmem:[#allocation6 + $0x98] sm:$0xff]
    %v889 = vld [vmem:[#allocation6 + $0xa0] sm:$0xff]
    %v890 = vld [vmem:[#allocation6 + $0xa8] sm:$0xff]
    %v891 = vld [vmem:[#allocation6 + $0xb0] sm:$0xff]
    %v892 = vld [vmem:[#allocation6 + $0xb8] sm:$0xff]
    %v893 = vld [vmem:[#allocation6 + $0xc0] sm:$0xff]
    %v894 = vld [vmem:[#allocation6 + $0xc8] sm:$0xff]
    %v895 = vld [vmem:[#allocation6 + $0xd0] sm:$0xff]
    %v896 = vld [vmem:[#allocation6 + $0xd8] sm:$0xff]
    %v897 = vld [vmem:[#allocation6 + $0xe0] sm:$0xff]
    %v898 = vld [vmem:[#allocation6 + $0xe8] sm:$0xff]
    %v899 = vld [vmem:[#allocation6 + $0xf0] sm:$0xff]
    %v900 = vld [vmem:[#allocation6 + $0xf8] sm:$0xff]
    %v901 = vld [vmem:[#allocation6 + $0x100] sm:$0xff]
    %v902 = vld [vmem:[#allocation6 + $0x108] sm:$0xff]
    %v903 = vld [vmem:[#allocation6 + $0x110] sm:$0xff]
    %v904 = vld [vmem:[#allocation6 + $0x118] sm:$0xff]
    %v905 = vld [vmem:[#allocation6 + $0x120] sm:$0xff]
    %v906 = vld [vmem:[#allocation6 + $0x128] sm:$0xff]
    %v907 = vld [vmem:[#allocation6 + $0x130] sm:$0xff]
    %v908 = vld [vmem:[#allocation6 + $0x138] sm:$0xff]
    %v909 = vld [vmem:[#allocation6 + $0x140] sm:$0xff]
    %v910 = vld [vmem:[#allocation6 + $0x148] sm:$0xff]
    %v911 = vld [vmem:[#allocation6 + $0x150] sm:$0xff]
    %v912 = vld [vmem:[#allocation6 + $0x158] sm:$0xff]
    %v913 = vld [vmem:[#allocation6 + $0x160] sm:$0xff]
    %v914 = vld [vmem:[#allocation6 + $0x168] sm:$0xff]
    %v915 = vld [vmem:[#allocation6 + $0x170] sm:$0xff]
    %v916 = vld [vmem:[#allocation6 + $0x178] sm:$0xff]
    %v917 = vld [vmem:[%s6] sm:$0x1]
    %918 = vmatprep.subr.mxu0 0.0
    %919 = vmatpush1.msra.mxu0 %v884
    %920 = vmatprep.subr.mxu0 0.0
    %921 = vmatpush1.msra.mxu0 %v883
    %922 = vmatprep.subr.mxu0 0.0
    %923 = vmatpush1.msra.mxu0 %v882
    %924 = vmatprep.subr.mxu0 0.0
    %925 = vmatpush1.msra.mxu0 %v881
    %926 = vmatprep.subr.mxu0 0.0
    %927 = vmatpush1.msra.mxu0 %v880
    %928 = vmatprep.subr.mxu0 0.0
    %929 = vmatpush1.msra.mxu0 %v879
    %930 = vmatprep.subr.mxu0 0.0
    %931 = vmatpush1.msra.mxu0 %v878
    %932 = vmatprep.subr.mxu0 0.0
    %933 = vmatpush1.msra.mxu0 %v877
    %934 = vmatprep.subr.mxu0 0.0
    %935 = vmatpush1.msra.mxu0 %v876
    %936 = vmatprep.subr.mxu0 0.0
    %937 = vmatpush1.msra.mxu0 %v875
    %938 = vmatprep.subr.mxu0 0.0
    %939 = vmatpush1.msra.mxu0 %v874
    %940 = vmatprep.subr.mxu0 0.0
    %941 = vmatpush1.msra.mxu0 %v873
    %942 = vmatprep.subr.mxu0 0.0
    %943 = vmatpush1.msra.mxu0 %v872
    %944 = vmatprep.subr.mxu0 0.0
    %945 = vmatpush1.msra.mxu0 %v871
    %946 = vmatprep.subr.mxu0 0.0
    %947 = vmatpush1.msra.mxu0 %v870
    %948 = vmatprep.subr.mxu0 0.0
    %949 = vmatpush1.msra.mxu0 %v869
    %950 = vmatprep.subr.mxu0 0.0
    %951 = vmatpush2.msra.mxu0 %v900
    %952 = vmatprep.subr.mxu0 0.0
    %953 = vmatpush2.msra.mxu0 %v899
    %954 = vmatprep.subr.mxu0 0.0
    %955 = vmatpush2.msra.mxu0 %v898
    %956 = vmatprep.subr.mxu0 0.0
    %957 = vmatpush2.msra.mxu0 %v897
    %958 = vmatprep.subr.mxu0 0.0
    %959 = vmatpush2.msra.mxu0 %v896
    %960 = vmatprep.subr.mxu0 0.0
    %961 = vmatpush2.msra.mxu0 %v895
    %962 = vmatprep.subr.mxu0 0.0
    %963 = vmatpush2.msra.mxu0 %v894
    %964 = vmatprep.subr.mxu0 0.0
    %965 = vmatpush2.msra.mxu0 %v893
    %966 = vmatprep.subr.mxu0 0.0
    %967 = vmatpush2.msra.mxu0 %v892
    %968 = vmatprep.subr.mxu0 0.0
    %969 = vmatpush2.msra.mxu0 %v891
    %970 = vmatprep.subr.mxu0 0.0
    %971 = vmatpush2.msra.mxu0 %v890
    %972 = vmatprep.subr.mxu0 0.0
    %973 = vmatpush2.msra.mxu0 %v889
    %974 = vmatprep.subr.mxu0 0.0
    %975 = vmatpush2.msra.mxu0 %v888
    %976 = vmatprep.subr.mxu0 0.0
    %977 = vmatpush2.msra.mxu0 %v887
    %978 = vmatprep.subr.mxu0 0.0
    %979 = vmatpush2.msra.mxu0 %v886
    %980 = vmatprep.subr.mxu0 0.0
    %981 = vmatpush2.msra.mxu0 %v885
    %982 = vmatprep.mubr.f32.mxu0 %v867
    %983 = vmatmul.mubr.f32.gmra.mxu0 %v866
    %v984 = vpop.f32.mrf.mxu0
    %v985 = vadd.f32 %v917, %v984
    %v986 = vpop.f32.mrf.mxu0
    %987 = vdwg.mxu0
    %988 = vmatprep.subr.mxu0 0.0
    %989 = vmatpush1.msra.mxu0 %v916
    %990 = vmatprep.subr.mxu0 0.0
    %991 = vmatpush1.msra.mxu0 %v915
    %992 = vmatprep.subr.mxu0 0.0
    %993 = vmatpush1.msra.mxu0 %v914
    %994 = vmatprep.subr.mxu0 0.0
    %995 = vmatpush1.msra.mxu0 %v913
    %996 = vmatprep.subr.mxu0 0.0
    %997 = vmatpush1.msra.mxu0 %v912
    %998 = vmatprep.subr.mxu0 0.0
    %999 = vmatpush1.msra.mxu0 %v911
    %1000 = vmatprep.subr.mxu0 0.0
    %1001 = vmatpush1.msra.mxu0 %v910
    %1002 = vmatprep.subr.mxu0 0.0
    %1003 = vmatpush1.msra.mxu0 %v909
    %1004 = vmatprep.subr.mxu0 0.0
    %1005 = vmatpush1.msra.mxu0 %v908
    %1006 = vmatprep.subr.mxu0 0.0
    %1007 = vmatpush1.msra.mxu0 %v907
    %1008 = vmatprep.subr.mxu0 0.0
    %1009 = vmatpush1.msra.mxu0 %v906
    %1010 = vmatprep.subr.mxu0 0.0
    %1011 = vmatpush1.msra.mxu0 %v905
    %1012 = vmatprep.subr.mxu0 0.0
    %1013 = vmatpush1.msra.mxu0 %v904
    %1014 = vmatprep.subr.mxu0 0.0
    %1015 = vmatpush1.msra.mxu0 %v903
    %1016 = vmatprep.subr.mxu0 0.0
    %1017 = vmatpush1.msra.mxu0 %v902
    %1018 = vmatprep.subr.mxu0 0.0
    %1019 = vmatpush1.msra.mxu0 %v901
    %1020 = vmatprep.subr.mxu0 0.0
    %1021 = vmatpush2.msra.mxu0 0.0
    %1022 = vmatprep.subr.mxu0 0.0
    %1023 = vmatpush2.msra.mxu0 0.0
    %1024 = vmatprep.subr.mxu0 0.0
    %1025 = vmatpush2.msra.mxu0 0.0
    %1026 = vmatprep.subr.mxu0 0.0
    %1027 = vmatpush2.msra.mxu0 0.0
    %1028 = vmatprep.subr.mxu0 0.0
    %1029 = vmatpush2.msra.mxu0 0.0
    %1030 = vmatprep.subr.mxu0 0.0
    %1031 = vmatpush2.msra.mxu0 0.0
    %1032 = vmatprep.subr.mxu0 0.0
    %1033 = vmatpush2.msra.mxu0 0.0
    %1034 = vmatprep.subr.mxu0 0.0
    %1035 = vmatpush2.msra.mxu0 0.0
    %1036 = vmatprep.subr.mxu0 0.0
    %1037 = vmatpush2.msra.mxu0 0.0
    %1038 = vmatprep.subr.mxu0 0.0
    %1039 = vmatpush2.msra.mxu0 0.0
    %1040 = vmatprep.subr.mxu0 0.0
    %1041 = vmatpush2.msra.mxu0 0.0
    %1042 = vmatprep.subr.mxu0 0.0
    %1043 = vmatpush2.msra.mxu0 0.0
    %1044 = vmatprep.subr.mxu0 0.0
    %1045 = vmatpush2.msra.mxu0 0.0
    %1046 = vmatprep.subr.mxu0 0.0
    %1047 = vmatpush2.msra.mxu0 0.0
    %1048 = vmatprep.subr.mxu0 0.0
    %1049 = vmatpush2.msra.mxu0 0.0
    %1050 = vmatprep.subr.mxu0 0.0
    %1051 = vmatpush2.msra.mxu0 0.0
    %1052 = vmatprep.mubr.f32.mxu0 0.0
    %1053 = vmatmul.mubr.f32.gmra.mxu0 %v868
    %v1054 = vpop.f32.mrf.mxu0
    %v1055 = vadd.f32 %v985, %v1054
    %v1056 = vpop.f32.mrf.mxu0
    %1057 = vdwg.mxu0
    %1058 = vst [vmem:[%s7] sm:$0x1] %v1055
    // Predicated region
    $region42: #{net_forward.1} parent=1 // pred_check
      _
    $region43: #{net_forward.1} parent=1 // pred_check_branch
      %1060 = sbr.rel (0) target = $region45
    $region44: #{net_forward.1} parent=1 // pred_region
      _
    $region45: #{net_forward.1} parent=1 // pred_fallthru
      _
    // Predicated region
    $region46: #{net_forward.1} parent=1 // pred_check
      _
    $region47: #{net_forward.1} parent=1 // pred_check_branch
      %1062 = sbr.rel (0) target = $region49
    $region48: #{net_forward.1} parent=1 // pred_region
      _
    $region49: #{net_forward.1} parent=1 // pred_fallthru
      _
    %1063 = vsyncpa [#allocation3], 1
    %1064 = vsyncpa [#allocation5], 1

</llo_original>
